<compile_context>
chip_gen: v7x
topology: tpu7x:2x2x1
jax: 0.10.0
libtpu: 0.0.40
codegen_flags: <defaults>
</compile_context>

<pallas_src>
import jax
import jax.numpy as jnp
import numpy as np
from jax.experimental import pallas as pl
from jax.experimental.pallas import tpu as pltpu


# ---------------------------------------------------------------------------
# small helpers
# ---------------------------------------------------------------------------
def _round_up(a, m):
    return -(-a // m) * m


def _padded_bytes(rows, cols, itemsize):
    """VMEM footprint of a 2-D block after (sublane, lane) tile padding."""
    sub = {4: 8, 2: 16, 1: 32}[itemsize]
    return _round_up(max(rows, 1), sub) * _round_up(max(cols, 1), 128) * itemsize


def _default_vmem_cap():
    """Conservative per-chip VMEM cap used for tile sizing / vmem_limit."""
    cap = 48 * 1024 * 1024            # safe on v7x (64 MiB physical)
    try:
        kind = jax.devices()[0].device_kind.lower()
    except Exception:
        return cap
    if "v2" in kind or "v3" in kind:
        return 12 * 1024 * 1024
    if "v4" in kind or "v5" in kind or "v6" in kind:
        return 96 * 1024 * 1024       # 128 MiB physical parts
    return cap


def _plan(B, C, D, in_itemsize, cap, derive_in_kernel=None):
    """Choose kernel mode, D tile, padded D, grid and vmem_limit_bytes."""
    margin = 2 * 1024 * 1024
    scratch = _padded_bytes(B + C, B + C, 4)
    invariants = 2 * (_padded_bytes(1, C, 4) + _padded_bytes(B, 1, 4))
    res_full = (2 * (_padded_bytes(B, C, 4) + 9 * _padded_bytes(B, B, 4)
                     + _padded_bytes(1, 1, 4)) + scratch + invariants)
    res_raw = (2 * (_padded_bytes(B, C, 4) + 2 * _padded_bytes(B, B, 4))
               + scratch + invariants)
    stream_per_128 = 2 * (_padded_bytes(B, 128, in_itemsize)
                          + _padded_bytes(C, 128, in_itemsize))

    if derive_in_kernel is None:
        derive_in_kernel = res_full + stream_per_128 + margin <= cap
    resident = res_full if derive_in_kernel else res_raw
    budget = max(cap - resident - margin, stream_per_128)

    full_d_bytes = 2 * (_padded_bytes(B, D, in_itemsize)
                        + _padded_bytes(C, D, in_itemsize))
    if D % 128 != 0 and full_d_bytes <= budget:
        td, d_pad = D, D                          # single full-D tile, no pad
    else:
        d_pad = _round_up(D, 128)
        td = min(d_pad, max(1, budget // stream_per_128) * 128)
        d_pad = _round_up(d_pad, td)
    grid_d = d_pad // td

    stream_bytes = 2 * (_padded_bytes(B, td, in_itemsize)
                        + _padded_bytes(C, td, in_itemsize))
    vmem_limit = int(min(cap, max(resident + stream_bytes + margin,
                                  32 * 1024 * 1024)))
    return bool(derive_in_kernel), int(td), int(d_pad), int(grid_d), vmem_limit


# ---------------------------------------------------------------------------
# kernel bodies
# ---------------------------------------------------------------------------
def _fast_recip(x):
    """EUP approx reciprocal + one Newton step (full f32 accuracy, off VALU)."""
    r = pl.reciprocal(x, approx=True)
    return r * (2.0 - x * r)


def _stream_grams(x_ref, w_ref, s_acc):
    """One D tile: S += [x; w] @ [x; w].T  (single fused MXU stream)."""
    @pl.when(pl.program_id(0) == 0)
    def _init():
        s_acc[...] = jnp.zeros_like(s_acc)

    stacked = jnp.concatenate([x_ref[...], w_ref[...]], axis=0)   # (B+C, td)
    s_acc[...] += jax.lax.dot_general(
        stacked, stacked, (((1,), (1,)), ((), ())),
        preferred_element_type=jnp.float32)


def _logits_dl_grams(s_acc, b_ref, y_ref, B, C):
    """Slice the stacked Gram; forward + per-sample CE logit grads + ddot."""
    S = s_acc[...]                                 # (B+C, B+C) f32
    xdot = S[:B, :B]                               # <x_i, x_j>
    logits = S[:B, B:] + b_ref[...]                # x @ W.T + b
    m = jnp.max(logits, axis=-1, keepdims=True)
    e = jnp.exp(logits - m)
    p = e * _fast_recip(jnp.sum(e, axis=-1, keepdims=True))
    onehot = (jax.lax.broadcasted_iota(jnp.int32, (B, C), 1) == y_ref[...])
    dl = p - onehot.astype(jnp.float32)            # per-sample bias grads
    ddot = jax.lax.dot_general(dl, dl, (((1,), (1,)), ((), ())),
                               preferred_element_type=jnp.float32)
    return logits, xdot, ddot


def _fused_full_kernel(x_ref, w_ref, b_ref, y_ref,
                       logits_ref,
                       sim_w_ref, gram_w_ref, cov_w_ref,
                       sim_b_ref, gram_b_ref, cov_b_ref,
                       sim_c_ref, gram_c_ref, cov_c_ref,
                       tr_ref, s_acc):
    _stream_grams(x_ref, w_ref, s_acc)

    @pl.when(pl.program_id(0) == pl.num_programs(0) - 1)
    def _finalize():
        B, C = logits_ref.shape
        inv_b = 1.0 / B                                       # trace-time const
        logits, xdot, ddot = _logits_dl_grams(s_acc, b_ref, y_ref, B, C)
        logits_ref[...] = logits

        row = jax.lax.broadcasted_iota(jnp.int32, (B, B), 0)
        col = jax.lax.broadcasted_iota(jnp.int32, (B, B), 1)
        eye = (row == col).astype(jnp.float32)

        def derive(G, sim_ref, gram_ref, cov_ref, center_gram):
            # G is bitwise symmetric -> sim/gram/cov already symmetric, so the
            # torch 0.5*(M + M.T) symmetrization is the identity and is skipped.
            Geye = G * eye
            diag_c = jnp.sum(Geye, axis=1, keepdims=True)     # (B,1) ||g_i||^2
            diag_r = jnp.sum(Geye, axis=0, keepdims=True)     # (1,B)
            r_c = jnp.sum(G, axis=1, keepdims=True)           # row sums
            r_r = jnp.sum(G, axis=0, keepdims=True)           # col sums
            s = jnp.sum(r_c, axis=0, keepdims=True)           # total sum
            inv_nc = _fast_recip(1e-9 + jnp.sqrt(diag_c))
            inv_nr = _fast_recip(1e-9 + jnp.sqrt(diag_r))
            sim_ref[...] = G * inv_nc * inv_nr
            covG = G - r_c * inv_b - r_r * inv_b + s * (inv_b * inv_b)
            gram_ref[...] = (covG if center_gram else G) * inv_b
            cov_ref[...] = covG * inv_b
            return diag_c, s

        derive(ddot * xdot, sim_w_ref, gram_w_ref, cov_w_ref, False)
        derive(ddot, sim_b_ref, gram_b_ref, cov_b_ref, False)
        # concatenated_weights: torch centers the concatenated grads in place
        # inside trace_of_cov() before graham/cov -> both use the centered Gram.
        diag_cat, s_cat = derive(ddot * (xdot + 1.0),
                                 sim_c_ref, gram_c_ref, cov_c_ref, True)
        tr_ref[...] = (jnp.sum(diag_cat, axis=0, keepdims=True)
                       - s_cat * inv_b) * inv_b


def _fused_raw_kernel(x_ref, w_ref, b_ref, y_ref,
                      logits_ref, ddot_ref, xdot_ref, s_acc):
    """Large-B / v7x mode: output only raw Grams, derive metrics in XLA."""
    _stream_grams(x_ref, w_ref, s_acc)

    @pl.when(pl.program_id(0) == pl.num_programs(0) - 1)
    def _finalize():
        B, C = logits_ref.shape
        logits, xdot, ddot = _logits_dl_grams(s_acc, b_ref, y_ref, B, C)
        logits_ref[...] = logits
        ddot_ref[...] = ddot
        xdot_ref[...] = xdot


# ---------------------------------------------------------------------------
# tiny XLA epilogue for the raw-Gram mode
# ---------------------------------------------------------------------------
def _derive_jnp(G, center_gram):
    B = G.shape[0]
    diag = jnp.diagonal(G).reshape(B, 1)
    inv_n = 1.0 / (1e-9 + jnp.sqrt(diag))
    sim = G * inv_n * inv_n.reshape(1, B)
    r = jnp.sum(G, axis=1, keepdims=True)
    s = jnp.sum(r)
    covG = G - r / B - r.reshape(1, B) / B + s / (B * B)
    gram = (covG if center_gram else G) / B
    cov = covG / B
    tr = (jnp.trace(G) - s / B) / B
    return sim, gram, cov, tr


@jax.jit
def _raw_epilogue(ddot, xdot):
    return (_derive_jnp(ddot * xdot, False),
            _derive_jnp(ddot, False),
            _derive_jnp(ddot * (xdot + 1.0), True))


# ---------------------------------------------------------------------------
# pallas_call wrapper
# ---------------------------------------------------------------------------
def fused_per_sample_grad_metrics(x, w, b, y, *, use_bf16_mxu=False,
                                  vmem_cap_bytes=None, derive_in_kernel=None):
    B, D = x.shape
    C = w.shape[0]
    in_dtype = jnp.bfloat16 if use_bf16_mxu else jnp.float32
    isz = 2 if use_bf16_mxu else 4
    cap = vmem_cap_bytes if vmem_cap_bytes is not None else _default_vmem_cap()
    derive_in_kernel, td, d_pad, grid_d, vmem_limit = _plan(
        B, C, D, isz, cap, derive_in_kernel)

    if x.dtype != in_dtype:
        x = x.astype(in_dtype)
    if w.dtype != in_dtype:
        w = w.astype(in_dtype)
    if d_pad != D:   # zero feature columns do not change logits or any Gram
        x = jnp.pad(x, ((0, 0), (0, d_pad - D)))
        w = jnp.pad(w, ((0, 0), (0, d_pad - D)))
    b2 = b.reshape(1, C).astype(jnp.float32)
    y2 = y.reshape(B, 1).astype(jnp.int32)

    # NOTE: if profiling shows exposed DMA, sweep pipeline_mode=pl.Buffered(3)
    # on the x/w specs (costs one extra tile buffer each).
    in_specs = [
        pl.BlockSpec((B, td), lambda d: (0, d)),   # x tile, streamed over D
        pl.BlockSpec((C, td), lambda d: (0, d)),   # W tile, streamed over D
        pl.BlockSpec((1, C), lambda d: (0, 0)),    # bias
        pl.BlockSpec((B, 1), lambda d: (0, 0)),    # labels
    ]
    scratch = [pltpu.VMEM((B + C, B + C), jnp.float32)]   # stacked Gram acc
    bb = jax.ShapeDtypeStruct((B, B), jnp.float32)
    bb_spec = pl.BlockSpec((B, B), lambda d: (0, 0))
    logit_shape = jax.ShapeDtypeStruct((B, C), jnp.float32)
    logit_spec = pl.BlockSpec((B, C), lambda d: (0, 0))
    cp = pltpu.CompilerParams(dimension_semantics=("arbitrary",),
                              vmem_limit_bytes=vmem_limit)

    if derive_in_kernel:
        out_shape = (logit_shape,) + (bb,) * 9 + (
            jax.ShapeDtypeStruct((1, 1), jnp.float32),)
        out_specs = (logit_spec,) + (bb_spec,) * 9 + (
            pl.BlockSpec((1, 1), lambda d: (0, 0)),)
        res = pl.pallas_call(
            _fused_full_kernel, out_shape=out_shape,
            grid_spec=pltpu.PrefetchScalarGridSpec(
                num_scalar_prefetch=0, grid=(grid_d,),
                in_specs=in_specs, out_specs=out_specs,
                scratch_shapes=scratch),
            compiler_params=cp)(x, w, b2, y2)
        (logits, sim_w, gram_w, cov_w, sim_b, gram_b, cov_b,
         sim_c, gram_c, cov_c, tr) = res
        metrics = {"linear.weight": (sim_w, gram_w, cov_w),
                   "linear.bias": (sim_b, gram_b, cov_b),
                   "concatenated_weights": (sim_c, gram_c, cov_c)}
        return logits, metrics, tr[0, 0]

    out_shape = (logit_shape, bb, bb)
    out_specs = (logit_spec, bb_spec, bb_spec)
    logits, ddot, xdot = pl.pallas_call(
        _fused_raw_kernel, out_shape=out_shape,
        grid_spec=pltpu.PrefetchScalarGridSpec(
            num_scalar_prefetch=0, grid=(grid_d,),
            in_specs=in_specs, out_specs=out_specs,
            scratch_shapes=scratch),
        compiler_params=cp)(x, w, b2, y2)
    (sim_w, gram_w, cov_w, _), (sim_b, gram_b, cov_b, _), \
        (sim_c, gram_c, cov_c, tr) = _raw_epilogue(ddot, xdot)
    metrics = {"linear.weight": (sim_w, gram_w, cov_w),
               "linear.bias": (sim_b, gram_b, cov_b),
               "concatenated_weights": (sim_c, gram_c, cov_c)}
    return logits, metrics, tr


# ---------------------------------------------------------------------------
# Python glue replicating PerSampleGrad.forward (x_true2=None path)
# ---------------------------------------------------------------------------
def per_sample_grad_forward(params, x_true1, y_true1, num_classes=None,
                            use_bf16_mxu=False, derive_in_kernel=None):
    w, b = params["linear.weight"], params["linear.bias"]
    C = w.shape[0]
    if num_classes is None:
        # torch uses y_true1.max()+1 (a host sync); the model class count is
        # static and equal whenever every class appears in the batch.
        num_classes = C

    logits, metrics, tr = fused_per_sample_grad_metrics(
        x_true1, w, b, y_true1, use_bf16_mxu=use_bf16_mxu,
        derive_in_kernel=derive_in_kernel)

    y_pred_label = jnp.argmax(logits, axis=1)
    # vectorized per-class misclassification; 0/0 -> NaN for absent classes,
    # matching torch's mean over an empty mask.
    wrong = (y_pred_label != y_true1).astype(jnp.float32)
    cls = jnp.arange(num_classes, dtype=y_true1.dtype)
    in_class = (y_true1[None, :] == cls[:, None]).astype(jnp.float32)
    mis_per_class = (in_class @ wrong) / in_class.sum(axis=1)

    matrices = {
        "similarity_11": {k: v[0] for k, v in metrics.items()},
        "graham_11": {k: v[1] for k, v in metrics.items()},
        "cov_11": {k: v[2] for k, v in metrics.items()},
    }
    # single host transfer for all small scalar stats (torch returns .item())
    mis_host, tr_host = jax.device_get((mis_per_class, tr))
    scalars = {"trace_of_cov_11": {"concatenated_weights": float(tr_host)}}
    prediction_stats = {f"misclassification_1_{i}": float(mis_host[i])
                        for i in range(num_classes)}
    # TODO(synk): x_true2 branch (similarity_12/22, graham_12/22, cov_12/22,
    # mean_prob_discrepancy) not implemented; it would reuse the same streamed
    # Gram kernel on the second batch plus a cross-batch (ddot12, xdot12) pass.
    return matrices, scalars, prediction_stats


# ---------------------------------------------------------------------------
# Pure-JAX reference replicating the torch module (for validation)
# ---------------------------------------------------------------------------
def _reference_metrics(params, x, y):
    hi = jax.lax.Precision.HIGHEST
    w, b = params["linear.weight"], params["linear.bias"]
    B = x.shape[0]
    C = w.shape[0]
    logits = jnp.dot(x, w.T, precision=hi) + b
    p = jax.nn.softmax(logits, axis=-1)
    dl = p - jax.nn.one_hot(y, C, dtype=jnp.float32)
    gw = (dl[:, :, None] * x[:, None, :]).reshape(B, -1)
    grads = {"linear.weight": gw, "linear.bias": dl,
             "concatenated_weights": jnp.concatenate([gw, dl], axis=1)}

    def torch_metrics(g, center_gram):
        gn = g / (1e-9 + jnp.linalg.norm(g, axis=1, keepdims=True))
        sim = jnp.dot(gn, gn.T, precision=hi)
        gc0 = g - g.mean(axis=0, keepdims=True)
        gg = gc0 if center_gram else g
        graham = jnp.dot(gg, gg.T, precision=hi) / B
        gc = gg - gg.mean(axis=0, keepdims=True)
        cov = jnp.dot(gc, gc.T, precision=hi) / B
        sym = lambda m: 0.5 * (m + m.T)
        tr = jnp.mean(jnp.sum(gc0 * gc0, axis=1))
        return sym(sim), sym(graham), sym(cov), tr

    return logits, {
        "linear.weight": torch_metrics(grads["linear.weight"], False),
        "linear.bias": torch_metrics(grads["linear.bias"], False),
        "concatenated_weights": torch_metrics(grads["concatenated_weights"], True),
    }


if __name__ == "__main__":
    B, D, C = 8, 32, 4
    key = jax.random.PRNGKey(0)
    kx, kw, kb = jax.random.split(key, 3)

    x_true1 = jax.random.normal(kx, (B, D), dtype=jnp.float32)
    y_true1 = jnp.arange(B, dtype=jnp.int32) % C          # every class present

    params = {
        "linear.weight": 0.1 * jax.random.normal(kw, (C, D), dtype=jnp.float32),
        "linear.bias": 0.01 * jax.random.normal(kb, (C,), dtype=jnp.float32),
    }

    _, ref = _reference_metrics(params, x_true1, y_true1)

    # validate both the fully-fused path and the raw-Gram (large-B/v7x) path
    for dk in (True, False):
        matrices, scalars, prediction_stats = per_sample_grad_forward(
            params, x_true1, y_true1, derive_in_kernel=dk)
        jax.block_until_ready(matrices)
        for tag in ("linear.weight", "linear.bias", "concatenated_weights"):
            sim_r, gram_r, cov_r, _ = ref[tag]
            np.testing.assert_allclose(np.asarray(matrices["similarity_11"][tag]),
                                       np.asarray(sim_r), rtol=1e-2, atol=1e-4)
            np.testing.assert_allclose(np.asarray(matrices["graham_11"][tag]),
                                       np.asarray(gram_r), rtol=1e-2, atol=1e-4)
            np.testing.assert_allclose(np.asarray(matrices["cov_11"][tag]),
                                       np.asarray(cov_r), rtol=1e-2, atol=1e-4)
        tr_ref = float(ref["concatenated_weights"][3])
        tr_got = scalars["trace_of_cov_11"]["concatenated_weights"]
        assert abs(tr_got - tr_ref) <= 1e-4 + 1e-2 * abs(tr_ref)
        assert matrices["similarity_11"]["concatenated_weights"].shape == (B, B)

    # bf16 streaming path: compile/run sanity only (opt-in, lower precision)
    m_bf16, _, _ = per_sample_grad_forward(params, x_true1, y_true1,
                                           use_bf16_mxu=True)
    jax.block_until_ready(m_bf16)

    print("KERNEL_OK")
</pallas_src>

<mosaic_0001>
module attributes {stable_mosaic.version = 11 : i64} {
  func.func @_fused_full_kernel(%arg0: i32, %arg1: memref<8x32xf32, #tpu.memory_space<vmem>>, %arg2: memref<4x32xf32, #tpu.memory_space<vmem>>, %arg3: memref<1x4xf32, #tpu.memory_space<vmem>>, %arg4: memref<8x1xi32, #tpu.memory_space<vmem>>, %arg5: memref<8x4xf32, #tpu.memory_space<vmem>>, %arg6: memref<8x8xf32, #tpu.memory_space<vmem>>, %arg7: memref<8x8xf32, #tpu.memory_space<vmem>>, %arg8: memref<8x8xf32, #tpu.memory_space<vmem>>, %arg9: memref<8x8xf32, #tpu.memory_space<vmem>>, %arg10: memref<8x8xf32, #tpu.memory_space<vmem>>, %arg11: memref<8x8xf32, #tpu.memory_space<vmem>>, %arg12: memref<8x8xf32, #tpu.memory_space<vmem>>, %arg13: memref<8x8xf32, #tpu.memory_space<vmem>>, %arg14: memref<8x8xf32, #tpu.memory_space<vmem>>, %arg15: memref<1x1xf32, #tpu.memory_space<vmem>>, %arg16: memref<12x12xf32, #tpu.memory_space<vmem>>) attributes {dimension_semantics = [#tpu.dimension_semantics<arbitrary>], iteration_bounds = array<i64: 1>, scalar_prefetch = 0 : i64, scratch_operands = 1 : i64, tpu.core_type = #tpu.core_type<tc>, window_params = [{transform_indices = @transform_0, window_bounds = array<i64: 8, 32>}, {transform_indices = @transform_1, window_bounds = array<i64: 4, 32>}, {pipeline_mode = #tpu.pipeline_mode<synchronous>, transform_indices = @transform_2, window_bounds = array<i64: 1, 4>}, {pipeline_mode = #tpu.pipeline_mode<synchronous>, transform_indices = @transform_3, window_bounds = array<i64: 8, 1>}, {pipeline_mode = #tpu.pipeline_mode<synchronous>, transform_indices = @transform_4, window_bounds = array<i64: 8, 4>}, {pipeline_mode = #tpu.pipeline_mode<synchronous>, transform_indices = @transform_5, window_bounds = array<i64: 8, 8>}, {pipeline_mode = #tpu.pipeline_mode<synchronous>, transform_indices = @transform_6, window_bounds = array<i64: 8, 8>}, {pipeline_mode = #tpu.pipeline_mode<synchronous>, transform_indices = @transform_7, window_bounds = array<i64: 8, 8>}, {pipeline_mode = #tpu.pipeline_mode<synchronous>, transform_indices = @transform_8, window_bounds = array<i64: 8, 8>}, {pipeline_mode = #tpu.pipeline_mode<synchronous>, transform_indices = @transform_9, window_bounds = array<i64: 8, 8>}, {pipeline_mode = #tpu.pipeline_mode<synchronous>, transform_indices = @transform_10, window_bounds = array<i64: 8, 8>}, {pipeline_mode = #tpu.pipeline_mode<synchronous>, transform_indices = @transform_11, window_bounds = array<i64: 8, 8>}, {pipeline_mode = #tpu.pipeline_mode<synchronous>, transform_indices = @transform_12, window_bounds = array<i64: 8, 8>}, {pipeline_mode = #tpu.pipeline_mode<synchronous>, transform_indices = @transform_13, window_bounds = array<i64: 8, 8>}, {pipeline_mode = #tpu.pipeline_mode<synchronous>, transform_indices = @transform_14, window_bounds = array<i64: 1, 1>}]} {
    %c0_i32 = arith.constant 0 : i32
    %0 = arith.cmpi eq, %arg0, %c0_i32 : i32
    %1 = arith.extui %0 : i1 to i32
    %c0_i32_0 = arith.constant 0 : i32
    %2 = arith.cmpi ne, %1, %c0_i32_0 : i32
    scf.if %2 {
      %cst_10 = arith.constant 0.000000e+00 : f32
      %13 = vector.broadcast %cst_10 : f32 to vector<12x12xf32>
      %c0_11 = arith.constant 0 : index
      %c0_12 = arith.constant 0 : index
      %14 = vector.load %arg16[%c0_11, %c0_12] : memref<12x12xf32, #tpu.memory_space<vmem>>, vector<12x12xf32>
      tpu.vector_store %arg16[%c0_11, %c0_12], %13 {strides = array<i32>} : memref<12x12xf32, #tpu.memory_space<vmem>>, vector<12x12xf32>,
    } else {
    }
    %c0 = arith.constant 0 : index
    %c0_1 = arith.constant 0 : index
    %3 = vector.load %arg1[%c0, %c0_1] : memref<8x32xf32, #tpu.memory_space<vmem>>, vector<8x32xf32>
    %c0_2 = arith.constant 0 : index
    %c0_3 = arith.constant 0 : index
    %4 = vector.load %arg2[%c0_2, %c0_3] : memref<4x32xf32, #tpu.memory_space<vmem>>, vector<4x32xf32>
    %5 = tpu.concatenate %3, %4 in 0 : vector<8x32xf32>, vector<4x32xf32> -> vector<12x32xf32>
    %c0_4 = arith.constant 0 : index
    %c0_5 = arith.constant 0 : index
    %6 = vector.load %arg16[%c0_4, %c0_5] : memref<12x12xf32, #tpu.memory_space<vmem>>, vector<12x12xf32>
    %cst = arith.constant dense<0.000000e+00> : vector<12x12xf32>
    %7 = tpu.matmul %5, %5, %cst {dimension_numbers = #tpu.dot_dimension_numbers<[1], [1], [0], [0], [0, 0, 1, 0], [], []>} : vector<12x32xf32>, vector<12x32xf32>, vector<12x12xf32> -> vector<12x12xf32>
    %8 = arith.addf %6, %7 : vector<12x12xf32>
    %c0_6 = arith.constant 0 : index
    %c0_7 = arith.constant 0 : index
    %9 = vector.load %arg16[%c0_6, %c0_7] : memref<12x12xf32, #tpu.memory_space<vmem>>, vector<12x12xf32>
    tpu.vector_store %arg16[%c0_6, %c0_7], %8 {strides = array<i32>} : memref<12x12xf32, #tpu.memory_space<vmem>>, vector<12x12xf32>,
    %c0_i32_8 = arith.constant 0 : i32
    %10 = arith.cmpi eq, %arg0, %c0_i32_8 : i32
    %11 = arith.extui %10 : i1 to i32
    %c0_i32_9 = arith.constant 0 : i32
    %12 = arith.cmpi ne, %11, %c0_i32_9 : i32
    scf.if %12 {
      %c0_10 = arith.constant 0 : index
      %c0_11 = arith.constant 0 : index
      %13 = vector.load %arg16[%c0_10, %c0_11] : memref<12x12xf32, #tpu.memory_space<vmem>>, vector<12x12xf32>
      %14 = vector.extract_strided_slice %13 {offsets = [0, 0], sizes = [8, 8], strides = [1, 1]} : vector<12x12xf32> to vector<8x8xf32>
      %15 = vector.extract_strided_slice %13 {offsets = [0, 8], sizes = [8, 4], strides = [1, 1]} : vector<12x12xf32> to vector<8x4xf32>
      %c0_12 = arith.constant 0 : index
      %c0_13 = arith.constant 0 : index
      %16 = vector.load %arg3[%c0_12, %c0_13] : memref<1x4xf32, #tpu.memory_space<vmem>>, vector<1x4xf32>
      %17 = vector.broadcast %16 : vector<1x4xf32> to vector<8x4xf32>
      %18 = arith.addf %15, %17 : vector<8x4xf32>
      %cst_14 = arith.constant dense<0xFF800000> : vector<8xf32>
      %19 = vector.multi_reduction <maximumf>, %18, %cst_14 [1] : vector<8x4xf32> to vector<8xf32>
      %20 = vector.shape_cast %19 : vector<8xf32> to vector<8x1xf32>
      %21 = vector.broadcast %20 : vector<8x1xf32> to vector<8x4xf32>
      %22 = arith.subf %18, %21 : vector<8x4xf32>
      %23 = math.exp %22 : vector<8x4xf32>
      %cst_15 = arith.constant dense<0.000000e+00> : vector<8xf32>
      %24 = vector.multi_reduction <add>, %23, %cst_15 [1] : vector<8x4xf32> to vector<8xf32>
      %25 = vector.shape_cast %24 : vector<8xf32> to vector<8x1xf32>
      %26 = tpu.reciprocal %25 {approx = true} : vector<8x1xf32> -> vector<8x1xf32>
      %27 = arith.mulf %25, %26 : vector<8x1xf32>
      %cst_16 = arith.constant 2.000000e+00 : f32
      %28 = vector.broadcast %cst_16 : f32 to vector<8x1xf32>
      %29 = arith.subf %28, %27 : vector<8x1xf32>
      %30 = arith.mulf %26, %29 : vector<8x1xf32>
      %31 = vector.broadcast %30 : vector<8x1xf32> to vector<8x4xf32>
      %32 = arith.mulf %23, %31 : vector<8x4xf32>
      %33 = tpu.iota {dimensions = array<i32: 1>} : vector<8x4xi32>
      %c0_17 = arith.constant 0 : index
      %c0_18 = arith.constant 0 : index
      %34 = vector.load %arg4[%c0_17, %c0_18] : memref<8x1xi32, #tpu.memory_space<vmem>>, vector<8x1xi32>
      %35 = vector.broadcast %34 : vector<8x1xi32> to vector<8x4xi32>
      %36 = arith.cmpi eq, %33, %35 : vector<8x4xi32>
      %37 = arith.extui %36 : vector<8x4xi1> to vector<8x4xi32>
      %38 = arith.sitofp %37 : vector<8x4xi32> to vector<8x4xf32>
      %39 = arith.subf %32, %38 : vector<8x4xf32>
      %cst_19 = arith.constant dense<0.000000e+00> : vector<8x8xf32>
      %40 = tpu.matmul %39, %39, %cst_19 {dimension_numbers = #tpu.dot_dimension_numbers<[1], [1], [0], [0], [0, 0, 1, 0], [], []>} : vector<8x4xf32>, vector<8x4xf32>, vector<8x8xf32> -> vector<8x8xf32>
      %c0_20 = arith.constant 0 : index
      %c0_21 = arith.constant 0 : index
      %41 = vector.load %arg5[%c0_20, %c0_21] : memref<8x4xf32, #tpu.memory_space<vmem>>, vector<8x4xf32>
      tpu.vector_store %arg5[%c0_20, %c0_21], %18 {strides = array<i32>} : memref<8x4xf32, #tpu.memory_space<vmem>>, vector<8x4xf32>,
      %42 = tpu.iota {dimensions = array<i32: 0>} : vector<8x8xi32>
      %43 = tpu.iota {dimensions = array<i32: 1>} : vector<8x8xi32>
      %44 = arith.cmpi eq, %42, %43 : vector<8x8xi32>
      %45 = arith.extui %44 : vector<8x8xi1> to vector<8x8xi32>
      %46 = arith.sitofp %45 : vector<8x8xi32> to vector<8x8xf32>
      %47 = arith.mulf %40, %14 : vector<8x8xf32>
      %48 = arith.mulf %47, %46 : vector<8x8xf32>
      %cst_22 = arith.constant dense<0.000000e+00> : vector<8xf32>
      %49 = vector.multi_reduction <add>, %48, %cst_22 [1] : vector<8x8xf32> to vector<8xf32>
      %50 = vector.shape_cast %49 : vector<8xf32> to vector<8x1xf32>
      %cst_23 = arith.constant dense<0.000000e+00> : vector<8xf32>
      %51 = vector.multi_reduction <add>, %48, %cst_23 [0] : vector<8x8xf32> to vector<8xf32>
      %52 = vector.shape_cast %51 : vector<8xf32> to vector<1x8xf32>
      %cst_24 = arith.constant dense<0.000000e+00> : vector<8xf32>
      %53 = vector.multi_reduction <add>, %47, %cst_24 [1] : vector<8x8xf32> to vector<8xf32>
      %54 = vector.shape_cast %53 : vector<8xf32> to vector<8x1xf32>
      %cst_25 = arith.constant dense<0.000000e+00> : vector<8xf32>
      %55 = vector.multi_reduction <add>, %47, %cst_25 [0] : vector<8x8xf32> to vector<8xf32>
      %56 = vector.shape_cast %55 : vector<8xf32> to vector<1x8xf32>
      %cst_26 = arith.constant dense<0.000000e+00> : vector<1xf32>
      %57 = vector.multi_reduction <add>, %54, %cst_26 [0] : vector<8x1xf32> to vector<1xf32>
      %58 = vector.shape_cast %57 : vector<1xf32> to vector<1x1xf32>
      %59 = math.sqrt %50 : vector<8x1xf32>
      %cst_27 = arith.constant 9.99999971E-10 : f32
      %60 = vector.broadcast %cst_27 : f32 to vector<8x1xf32>
      %61 = arith.addf %60, %59 : vector<8x1xf32>
      %62 = tpu.reciprocal %61 {approx = true} : vector<8x1xf32> -> vector<8x1xf32>
      %63 = arith.mulf %61, %62 : vector<8x1xf32>
      %cst_28 = arith.constant 2.000000e+00 : f32
      %64 = vector.broadcast %cst_28 : f32 to vector<8x1xf32>
      %65 = arith.subf %64, %63 : vector<8x1xf32>
      %66 = arith.mulf %62, %65 : vector<8x1xf32>
      %67 = math.sqrt %52 : vector<1x8xf32>
      %cst_29 = arith.constant 9.99999971E-10 : f32
      %68 = vector.broadcast %cst_29 : f32 to vector<1x8xf32>
      %69 = arith.addf %68, %67 : vector<1x8xf32>
      %70 = tpu.reciprocal %69 {approx = true} : vector<1x8xf32> -> vector<1x8xf32>
      %71 = arith.mulf %69, %70 : vector<1x8xf32>
      %cst_30 = arith.constant 2.000000e+00 : f32
      %72 = vector.broadcast %cst_30 : f32 to vector<1x8xf32>
      %73 = arith.subf %72, %71 : vector<1x8xf32>
      %74 = arith.mulf %70, %73 : vector<1x8xf32>
      %75 = vector.broadcast %66 : vector<8x1xf32> to vector<8x8xf32>
      %76 = arith.mulf %47, %75 : vector<8x8xf32>
      %77 = vector.broadcast %74 : vector<1x8xf32> to vector<8x8xf32>
      %78 = arith.mulf %76, %77 : vector<8x8xf32>
      %c0_31 = arith.constant 0 : index
      %c0_32 = arith.constant 0 : index
      %79 = vector.load %arg6[%c0_31, %c0_32] : memref<8x8xf32, #tpu.memory_space<vmem>>, vector<8x8xf32>
      tpu.vector_store %arg6[%c0_31, %c0_32], %78 {strides = array<i32>} : memref<8x8xf32, #tpu.memory_space<vmem>>, vector<8x8xf32>,
      %cst_33 = arith.constant 1.250000e-01 : f32
      %80 = vector.broadcast %cst_33 : f32 to vector<8x1xf32>
      %81 = arith.mulf %54, %80 : vector<8x1xf32>
      %82 = vector.broadcast %81 : vector<8x1xf32> to vector<8x8xf32>
      %83 = arith.subf %47, %82 : vector<8x8xf32>
      %cst_34 = arith.constant 1.250000e-01 : f32
      %84 = vector.broadcast %cst_34 : f32 to vector<1x8xf32>
      %85 = arith.mulf %56, %84 : vector<1x8xf32>
      %86 = vector.broadcast %85 : vector<1x8xf32> to vector<8x8xf32>
      %87 = arith.subf %83, %86 : vector<8x8xf32>
      %cst_35 = arith.constant 1.562500e-02 : f32
      %88 = vector.broadcast %cst_35 : f32 to vector<1x1xf32>
      %89 = arith.mulf %58, %88 : vector<1x1xf32>
      %90 = vector.broadcast %89 : vector<1x1xf32> to vector<8x8xf32>
      %91 = arith.addf %87, %90 : vector<8x8xf32>
      %cst_36 = arith.constant 1.250000e-01 : f32
      %92 = vector.broadcast %cst_36 : f32 to vector<8x8xf32>
      %93 = arith.mulf %47, %92 : vector<8x8xf32>
      %c0_37 = arith.constant 0 : index
      %c0_38 = arith.constant 0 : index
      %94 = vector.load %arg7[%c0_37, %c0_38] : memref<8x8xf32, #tpu.memory_space<vmem>>, vector<8x8xf32>
      tpu.vector_store %arg7[%c0_37, %c0_38], %93 {strides = array<i32>} : memref<8x8xf32, #tpu.memory_space<vmem>>, vector<8x8xf32>,
      %cst_39 = arith.constant 1.250000e-01 : f32
      %95 = vector.broadcast %cst_39 : f32 to vector<8x8xf32>
      %96 = arith.mulf %91, %95 : vector<8x8xf32>
      %c0_40 = arith.constant 0 : index
      %c0_41 = arith.constant 0 : index
      %97 = vector.load %arg8[%c0_40, %c0_41] : memref<8x8xf32, #tpu.memory_space<vmem>>, vector<8x8xf32>
      tpu.vector_store %arg8[%c0_40, %c0_41], %96 {strides = array<i32>} : memref<8x8xf32, #tpu.memory_space<vmem>>, vector<8x8xf32>,
      %98 = arith.mulf %40, %46 : vector<8x8xf32>
      %cst_42 = arith.constant dense<0.000000e+00> : vector<8xf32>
      %99 = vector.multi_reduction <add>, %98, %cst_42 [1] : vector<8x8xf32> to vector<8xf32>
      %100 = vector.shape_cast %99 : vector<8xf32> to vector<8x1xf32>
      %cst_43 = arith.constant dense<0.000000e+00> : vector<8xf32>
      %101 = vector.multi_reduction <add>, %98, %cst_43 [0] : vector<8x8xf32> to vector<8xf32>
      %102 = vector.shape_cast %101 : vector<8xf32> to vector<1x8xf32>
      %cst_44 = arith.constant dense<0.000000e+00> : vector<8xf32>
      %103 = vector.multi_reduction <add>, %40, %cst_44 [1] : vector<8x8xf32> to vector<8xf32>
      %104 = vector.shape_cast %103 : vector<8xf32> to vector<8x1xf32>
      %cst_45 = arith.constant dense<0.000000e+00> : vector<8xf32>
      %105 = vector.multi_reduction <add>, %40, %cst_45 [0] : vector<8x8xf32> to vector<8xf32>
      %106 = vector.shape_cast %105 : vector<8xf32> to vector<1x8xf32>
      %cst_46 = arith.constant dense<0.000000e+00> : vector<1xf32>
      %107 = vector.multi_reduction <add>, %104, %cst_46 [0] : vector<8x1xf32> to vector<1xf32>
      %108 = vector.shape_cast %107 : vector<1xf32> to vector<1x1xf32>
      %109 = math.sqrt %100 : vector<8x1xf32>
      %cst_47 = arith.constant 9.99999971E-10 : f32
      %110 = vector.broadcast %cst_47 : f32 to vector<8x1xf32>
      %111 = arith.addf %110, %109 : vector<8x1xf32>
      %112 = tpu.reciprocal %111 {approx = true} : vector<8x1xf32> -> vector<8x1xf32>
      %113 = arith.mulf %111, %112 : vector<8x1xf32>
      %cst_48 = arith.constant 2.000000e+00 : f32
      %114 = vector.broadcast %cst_48 : f32 to vector<8x1xf32>
      %115 = arith.subf %114, %113 : vector<8x1xf32>
      %116 = arith.mulf %112, %115 : vector<8x1xf32>
      %117 = math.sqrt %102 : vector<1x8xf32>
      %cst_49 = arith.constant 9.99999971E-10 : f32
      %118 = vector.broadcast %cst_49 : f32 to vector<1x8xf32>
      %119 = arith.addf %118, %117 : vector<1x8xf32>
      %120 = tpu.reciprocal %119 {approx = true} : vector<1x8xf32> -> vector<1x8xf32>
      %121 = arith.mulf %119, %120 : vector<1x8xf32>
      %cst_50 = arith.constant 2.000000e+00 : f32
      %122 = vector.broadcast %cst_50 : f32 to vector<1x8xf32>
      %123 = arith.subf %122, %121 : vector<1x8xf32>
      %124 = arith.mulf %120, %123 : vector<1x8xf32>
      %125 = vector.broadcast %116 : vector<8x1xf32> to vector<8x8xf32>
      %126 = arith.mulf %40, %125 : vector<8x8xf32>
      %127 = vector.broadcast %124 : vector<1x8xf32> to vector<8x8xf32>
      %128 = arith.mulf %126, %127 : vector<8x8xf32>
      %c0_51 = arith.constant 0 : index
      %c0_52 = arith.constant 0 : index
      %129 = vector.load %arg9[%c0_51, %c0_52] : memref<8x8xf32, #tpu.memory_space<vmem>>, vector<8x8xf32>
      tpu.vector_store %arg9[%c0_51, %c0_52], %128 {strides = array<i32>} : memref<8x8xf32, #tpu.memory_space<vmem>>, vector<8x8xf32>,
      %cst_53 = arith.constant 1.250000e-01 : f32
      %130 = vector.broadcast %cst_53 : f32 to vector<8x1xf32>
      %131 = arith.mulf %104, %130 : vector<8x1xf32>
      %132 = vector.broadcast %131 : vector<8x1xf32> to vector<8x8xf32>
      %133 = arith.subf %40, %132 : vector<8x8xf32>
      %cst_54 = arith.constant 1.250000e-01 : f32
      %134 = vector.broadcast %cst_54 : f32 to vector<1x8xf32>
      %135 = arith.mulf %106, %134 : vector<1x8xf32>
      %136 = vector.broadcast %135 : vector<1x8xf32> to vector<8x8xf32>
      %137 = arith.subf %133, %136 : vector<8x8xf32>
      %cst_55 = arith.constant 1.562500e-02 : f32
      %138 = vector.broadcast %cst_55 : f32 to vector<1x1xf32>
      %139 = arith.mulf %108, %138 : vector<1x1xf32>
      %140 = vector.broadcast %139 : vector<1x1xf32> to vector<8x8xf32>
      %141 = arith.addf %137, %140 : vector<8x8xf32>
      %cst_56 = arith.constant 1.250000e-01 : f32
      %142 = vector.broadcast %cst_56 : f32 to vector<8x8xf32>
      %143 = arith.mulf %40, %142 : vector<8x8xf32>
      %c0_57 = arith.constant 0 : index
      %c0_58 = arith.constant 0 : index
      %144 = vector.load %arg10[%c0_57, %c0_58] : memref<8x8xf32, #tpu.memory_space<vmem>>, vector<8x8xf32>
      tpu.vector_store %arg10[%c0_57, %c0_58], %143 {strides = array<i32>} : memref<8x8xf32, #tpu.memory_space<vmem>>, vector<8x8xf32>,
      %cst_59 = arith.constant 1.250000e-01 : f32
      %145 = vector.broadcast %cst_59 : f32 to vector<8x8xf32>
      %146 = arith.mulf %141, %145 : vector<8x8xf32>
      %c0_60 = arith.constant 0 : index
      %c0_61 = arith.constant 0 : index
      %147 = vector.load %arg11[%c0_60, %c0_61] : memref<8x8xf32, #tpu.memory_space<vmem>>, vector<8x8xf32>
      tpu.vector_store %arg11[%c0_60, %c0_61], %146 {strides = array<i32>} : memref<8x8xf32, #tpu.memory_space<vmem>>, vector<8x8xf32>,
      %cst_62 = arith.constant 1.000000e+00 : f32
      %148 = vector.broadcast %cst_62 : f32 to vector<8x8xf32>
      %149 = arith.addf %14, %148 : vector<8x8xf32>
      %150 = arith.mulf %40, %149 : vector<8x8xf32>
      %151 = arith.mulf %150, %46 : vector<8x8xf32>
      %cst_63 = arith.constant dense<0.000000e+00> : vector<8xf32>
      %152 = vector.multi_reduction <add>, %151, %cst_63 [1] : vector<8x8xf32> to vector<8xf32>
      %153 = vector.shape_cast %152 : vector<8xf32> to vector<8x1xf32>
      %cst_64 = arith.constant dense<0.000000e+00> : vector<8xf32>
      %154 = vector.multi_reduction <add>, %151, %cst_64 [0] : vector<8x8xf32> to vector<8xf32>
      %155 = vector.shape_cast %154 : vector<8xf32> to vector<1x8xf32>
      %cst_65 = arith.constant dense<0.000000e+00> : vector<8xf32>
      %156 = vector.multi_reduction <add>, %150, %cst_65 [1] : vector<8x8xf32> to vector<8xf32>
      %157 = vector.shape_cast %156 : vector<8xf32> to vector<8x1xf32>
      %cst_66 = arith.constant dense<0.000000e+00> : vector<8xf32>
      %158 = vector.multi_reduction <add>, %150, %cst_66 [0] : vector<8x8xf32> to vector<8xf32>
      %159 = vector.shape_cast %158 : vector<8xf32> to vector<1x8xf32>
      %cst_67 = arith.constant dense<0.000000e+00> : vector<1xf32>
      %160 = vector.multi_reduction <add>, %157, %cst_67 [0] : vector<8x1xf32> to vector<1xf32>
      %161 = vector.shape_cast %160 : vector<1xf32> to vector<1x1xf32>
      %162 = math.sqrt %153 : vector<8x1xf32>
      %cst_68 = arith.constant 9.99999971E-10 : f32
      %163 = vector.broadcast %cst_68 : f32 to vector<8x1xf32>
      %164 = arith.addf %163, %162 : vector<8x1xf32>
      %165 = tpu.reciprocal %164 {approx = true} : vector<8x1xf32> -> vector<8x1xf32>
      %166 = arith.mulf %164, %165 : vector<8x1xf32>
      %cst_69 = arith.constant 2.000000e+00 : f32
      %167 = vector.broadcast %cst_69 : f32 to vector<8x1xf32>
      %168 = arith.subf %167, %166 : vector<8x1xf32>
      %169 = arith.mulf %165, %168 : vector<8x1xf32>
      %170 = math.sqrt %155 : vector<1x8xf32>
      %cst_70 = arith.constant 9.99999971E-10 : f32
      %171 = vector.broadcast %cst_70 : f32 to vector<1x8xf32>
      %172 = arith.addf %171, %170 : vector<1x8xf32>
      %173 = tpu.reciprocal %172 {approx = true} : vector<1x8xf32> -> vector<1x8xf32>
      %174 = arith.mulf %172, %173 : vector<1x8xf32>
      %cst_71 = arith.constant 2.000000e+00 : f32
      %175 = vector.broadcast %cst_71 : f32 to vector<1x8xf32>
      %176 = arith.subf %175, %174 : vector<1x8xf32>
      %177 = arith.mulf %173, %176 : vector<1x8xf32>
      %178 = vector.broadcast %169 : vector<8x1xf32> to vector<8x8xf32>
      %179 = arith.mulf %150, %178 : vector<8x8xf32>
      %180 = vector.broadcast %177 : vector<1x8xf32> to vector<8x8xf32>
      %181 = arith.mulf %179, %180 : vector<8x8xf32>
      %c0_72 = arith.constant 0 : index
      %c0_73 = arith.constant 0 : index
      %182 = vector.load %arg12[%c0_72, %c0_73] : memref<8x8xf32, #tpu.memory_space<vmem>>, vector<8x8xf32>
      tpu.vector_store %arg12[%c0_72, %c0_73], %181 {strides = array<i32>} : memref<8x8xf32, #tpu.memory_space<vmem>>, vector<8x8xf32>,
      %cst_74 = arith.constant 1.250000e-01 : f32
      %183 = vector.broadcast %cst_74 : f32 to vector<8x1xf32>
      %184 = arith.mulf %157, %183 : vector<8x1xf32>
      %185 = vector.broadcast %184 : vector<8x1xf32> to vector<8x8xf32>
      %186 = arith.subf %150, %185 : vector<8x8xf32>
      %cst_75 = arith.constant 1.250000e-01 : f32
      %187 = vector.broadcast %cst_75 : f32 to vector<1x8xf32>
      %188 = arith.mulf %159, %187 : vector<1x8xf32>
      %189 = vector.broadcast %188 : vector<1x8xf32> to vector<8x8xf32>
      %190 = arith.subf %186, %189 : vector<8x8xf32>
      %cst_76 = arith.constant 1.562500e-02 : f32
      %191 = vector.broadcast %cst_76 : f32 to vector<1x1xf32>
      %192 = arith.mulf %161, %191 : vector<1x1xf32>
      %193 = vector.broadcast %192 : vector<1x1xf32> to vector<8x8xf32>
      %194 = arith.addf %190, %193 : vector<8x8xf32>
      %cst_77 = arith.constant 1.250000e-01 : f32
      %195 = vector.broadcast %cst_77 : f32 to vector<8x8xf32>
      %196 = arith.mulf %194, %195 : vector<8x8xf32>
      %c0_78 = arith.constant 0 : index
      %c0_79 = arith.constant 0 : index
      %197 = vector.load %arg13[%c0_78, %c0_79] : memref<8x8xf32, #tpu.memory_space<vmem>>, vector<8x8xf32>
      tpu.vector_store %arg13[%c0_78, %c0_79], %196 {strides = array<i32>} : memref<8x8xf32, #tpu.memory_space<vmem>>, vector<8x8xf32>,
      %cst_80 = arith.constant 1.250000e-01 : f32
      %198 = vector.broadcast %cst_80 : f32 to vector<8x8xf32>
      %199 = arith.mulf %194, %198 : vector<8x8xf32>
      %c0_81 = arith.constant 0 : index
      %c0_82 = arith.constant 0 : index
      %200 = vector.load %arg14[%c0_81, %c0_82] : memref<8x8xf32, #tpu.memory_space<vmem>>, vector<8x8xf32>
      tpu.vector_store %arg14[%c0_81, %c0_82], %199 {strides = array<i32>} : memref<8x8xf32, #tpu.memory_space<vmem>>, vector<8x8xf32>,
      %cst_83 = arith.constant dense<0.000000e+00> : vector<1xf32>
      %201 = vector.multi_reduction <add>, %153, %cst_83 [0] : vector<8x1xf32> to vector<1xf32>
      %202 = vector.shape_cast %201 : vector<1xf32> to vector<1x1xf32>
      %cst_84 = arith.constant 1.250000e-01 : f32
      %203 = vector.broadcast %cst_84 : f32 to vector<1x1xf32>
      %204 = arith.mulf %161, %203 : vector<1x1xf32>
      %205 = arith.subf %202, %204 : vector<1x1xf32>
      %cst_85 = arith.constant 1.250000e-01 : f32
      %206 = vector.broadcast %cst_85 : f32 to vector<1x1xf32>
      %207 = arith.mulf %205, %206 : vector<1x1xf32>
      %c0_86 = arith.constant 0 : index
      %c0_87 = arith.constant 0 : index
      %208 = vector.load %arg15[%c0_86, %c0_87] : memref<1x1xf32, #tpu.memory_space<vmem>>, vector<1x1xf32>
      tpu.vector_store %arg15[%c0_86, %c0_87], %207 {strides = array<i32>} : memref<1x1xf32, #tpu.memory_space<vmem>>, vector<1x1xf32>,
    } else {
    }
    return
  }
  func.func @transform_0(%arg0: i32) -> (i32, i32) {
    %c0_i32 = arith.constant 0 : i32
    %c0_i32_0 = arith.constant 0 : i32
    return %c0_i32, %arg0 : i32, i32
  }
  func.func @transform_1(%arg0: i32) -> (i32, i32) {
    %c0_i32 = arith.constant 0 : i32
    %c0_i32_0 = arith.constant 0 : i32
    return %c0_i32, %arg0 : i32, i32
  }
  func.func @transform_2(%arg0: i32) -> (i32, i32) {
    %c0_i32 = arith.constant 0 : i32
    %c0_i32_0 = arith.constant 0 : i32
    %c0_i32_1 = arith.constant 0 : i32
    return %c0_i32, %c0_i32_0 : i32, i32
  }
  func.func @transform_3(%arg0: i32) -> (i32, i32) {
    %c0_i32 = arith.constant 0 : i32
    %c0_i32_0 = arith.constant 0 : i32
    %c0_i32_1 = arith.constant 0 : i32
    return %c0_i32, %c0_i32_0 : i32, i32
  }
  func.func @transform_4(%arg0: i32) -> (i32, i32) {
    %c0_i32 = arith.constant 0 : i32
    %c0_i32_0 = arith.constant 0 : i32
    %c0_i32_1 = arith.constant 0 : i32
    return %c0_i32, %c0_i32_0 : i32, i32
  }
  func.func @transform_5(%arg0: i32) -> (i32, i32) {
    %c0_i32 = arith.constant 0 : i32
    %c0_i32_0 = arith.constant 0 : i32
    %c0_i32_1 = arith.constant 0 : i32
    return %c0_i32, %c0_i32_0 : i32, i32
  }
  func.func @transform_6(%arg0: i32) -> (i32, i32) {
    %c0_i32 = arith.constant 0 : i32
    %c0_i32_0 = arith.constant 0 : i32
    %c0_i32_1 = arith.constant 0 : i32
    return %c0_i32, %c0_i32_0 : i32, i32
  }
  func.func @transform_7(%arg0: i32) -> (i32, i32) {
    %c0_i32 = arith.constant 0 : i32
    %c0_i32_0 = arith.constant 0 : i32
    %c0_i32_1 = arith.constant 0 : i32
    return %c0_i32, %c0_i32_0 : i32, i32
  }
  func.func @transform_8(%arg0: i32) -> (i32, i32) {
    %c0_i32 = arith.constant 0 : i32
    %c0_i32_0 = arith.constant 0 : i32
    %c0_i32_1 = arith.constant 0 : i32
    return %c0_i32, %c0_i32_0 : i32, i32
  }
  func.func @transform_9(%arg0: i32) -> (i32, i32) {
    %c0_i32 = arith.constant 0 : i32
    %c0_i32_0 = arith.constant 0 : i32
    %c0_i32_1 = arith.constant 0 : i32
    return %c0_i32, %c0_i32_0 : i32, i32
  }
  func.func @transform_10(%arg0: i32) -> (i32, i32) {
    %c0_i32 = arith.constant 0 : i32
    %c0_i32_0 = arith.constant 0 : i32
    %c0_i32_1 = arith.constant 0 : i32
    return %c0_i32, %c0_i32_0 : i32, i32
  }
  func.func @transform_11(%arg0: i32) -> (i32, i32) {
    %c0_i32 = arith.constant 0 : i32
    %c0_i32_0 = arith.constant 0 : i32
    %c0_i32_1 = arith.constant 0 : i32
    return %c0_i32, %c0_i32_0 : i32, i32
  }
  func.func @transform_12(%arg0: i32) -> (i32, i32) {
    %c0_i32 = arith.constant 0 : i32
    %c0_i32_0 = arith.constant 0 : i32
    %c0_i32_1 = arith.constant 0 : i32
    return %c0_i32, %c0_i32_0 : i32, i32
  }
  func.func @transform_13(%arg0: i32) -> (i32, i32) {
    %c0_i32 = arith.constant 0 : i32
    %c0_i32_0 = arith.constant 0 : i32
    %c0_i32_1 = arith.constant 0 : i32
    return %c0_i32, %c0_i32_0 : i32, i32
  }
  func.func @transform_14(%arg0: i32) -> (i32, i32) {
    %c0_i32 = arith.constant 0 : i32
    %c0_i32_0 = arith.constant 0 : i32
    %c0_i32_1 = arith.constant 0 : i32
    return %c0_i32, %c0_i32_0 : i32, i32
  }
}

</mosaic_0001>

<llo_original>
// kernel: tpu_custom_call.1
$region0: #{tpu_custom_call.1}
  #allocation0 [shape = 'u32[]', space=smem, size = 0x4, offset = 0x4, fixed_abs, tag = 'smem constant byte address 0x4 - core index']
  #allocation1 [shape = 'u32[144,128]{1,0:T(1,128)}', space=vmem, size = 0x12000, scoped, tag = 'internal scratch']
  #allocation2 [shape = 'f32[12,12]{1,0:T(8,128)}', space=vmem, size = 0x2000, scoped, tag = 'scratch operand']
  %s0 = inlined_call_operand.vmem [shape: f32[8,32], index: 0, kind: input, shape index: {}]
  %s1 = inlined_call_operand.vmem [shape: f32[4,32], index: 1, kind: input, shape index: {}]
  %s2 = inlined_call_operand.vmem [shape: f32[1,4], index: 2, kind: input, shape index: {}]
  %s3 = inlined_call_operand.vmem [shape: s32[8,1], index: 3, kind: input, shape index: {}]
  %s4 = inlined_call_operand.vmem [shape: f32[8,4], index: 4, kind: output, shape index: {0}]
  %s5 = inlined_call_operand.hbm [shape: f32[8,8], index: 5, kind: output, shape index: {1}]
  %s6 = inlined_call_operand.hbm [shape: f32[8,8], index: 6, kind: output, shape index: {2}]
  %s7 = inlined_call_operand.hbm [shape: f32[8,8], index: 7, kind: output, shape index: {3}]
  %s8 = inlined_call_operand.hbm [shape: f32[8,8], index: 8, kind: output, shape index: {4}]
  %s9 = inlined_call_operand.hbm [shape: f32[8,8], index: 9, kind: output, shape index: {5}]
  %s10 = inlined_call_operand.hbm [shape: f32[8,8], index: 10, kind: output, shape index: {6}]
  %s11 = inlined_call_operand.hbm [shape: f32[8,8], index: 11, kind: output, shape index: {7}]
  %s12 = inlined_call_operand.hbm [shape: f32[8,8], index: 12, kind: output, shape index: {8}]
  %s13 = inlined_call_operand.hbm [shape: f32[8,8], index: 13, kind: output, shape index: {9}]
  %s14 = inlined_call_operand.hbm [shape: f32[1,1], index: 14, kind: output, shape index: {10}]
  %15 = xla_tuple %s4, %s5, %s6, %s7, %s8, %s9, %s10, %s11, %s12, %s13, %s14
  %s16 = sld [smem:[#allocation0]]
  $region114: #{tpu_custom_call.1} parent=0
    _
  %s18 = ssub.s32 1, %s16
  %s19 = scalar_select 0, %s18, %s16
  $region1: #{tpu_custom_call.1} parent=0
    #allocation3 [shape = 'u8[4096]{0}', space=vmem, size = 0x1000, scoped, tag = 'output window, operand 1, single buffered']
    #allocation4 [shape = 's32[1]{0}', space=sflag, size = 0x4, scoped, tag = 'scoped memory for tpu_custom_call.1']
    #allocation5 [shape = 'u8[4096]{0}', space=vmem, size = 0x1000, scoped, tag = 'output window, operand 2, single buffered']
    #allocation6 [shape = 's32[1]{0}', space=sflag, size = 0x4, scoped, tag = 'scoped memory for tpu_custom_call.1']
    #allocation7 [shape = 'u8[4096]{0}', space=vmem, size = 0x1000, scoped, tag = 'output window, operand 3, single buffered']
    #allocation8 [shape = 'u8[4096]{0}', space=vmem, size = 0x1000, scoped, tag = 'output window, operand 4, single buffered']
    #allocation9 [shape = 's32[1]{0}', space=sflag, size = 0x4, scoped, tag = 'scoped memory for tpu_custom_call.1']
    #allocation10 [shape = 'u8[4096]{0}', space=vmem, size = 0x1000, scoped, tag = 'output window, operand 5, single buffered']
    #allocation11 [shape = 'u8[4096]{0}', space=vmem, size = 0x1000, scoped, tag = 'output window, operand 6, single buffered']
    #allocation12 [shape = 's32[1]{0}', space=sflag, size = 0x4, scoped, tag = 'scoped memory for tpu_custom_call.1']
    #allocation13 [shape = 'u8[4096]{0}', space=vmem, size = 0x1000, scoped, tag = 'output window, operand 7, single buffered']
    #allocation14 [shape = 'u8[4096]{0}', space=vmem, size = 0x1000, scoped, tag = 'output window, operand 8, single buffered']
    #allocation15 [shape = 's32[1]{0}', space=sflag, size = 0x4, scoped, tag = 'scoped memory for tpu_custom_call.1']
    #allocation16 [shape = 'u8[4096]{0}', space=vmem, size = 0x1000, scoped, tag = 'output window, operand 9, single buffered']
    #allocation17 [shape = 'u8[512]{0}', space=vmem, size = 0x400, scoped, tag = 'output window, operand 10, single buffered']
    #allocation18 [shape = 's32[1]{0}', space=sflag, size = 0x4, scoped, tag = 'scoped memory for tpu_custom_call.1']
    %20 = vsyncpa [#allocation4], 0
    %21 = vsyncpa [#allocation6], 0
    %22 = vsyncpa [#allocation9], 0
    %23 = vsyncpa [#allocation12], 0
    %24 = vsyncpa [#allocation15], 0
    %25 = vsyncpa [#allocation18], 0
    // Predicated region
    $region2: #{tpu_custom_call.1} parent=1 // pred_check
      _
    $region3: #{tpu_custom_call.1} parent=1 // pred_check_branch
      %27 = sbr.rel (0) target = $region5
    $region4: #{tpu_custom_call.1} parent=1 // pred_region
      _
    $region5: #{tpu_custom_call.1} parent=1 // pred_fallthru
      _
    // Predicated region
    $region6: #{tpu_custom_call.1} parent=1 // pred_check
      _
    $region7: #{tpu_custom_call.1} parent=1 // pred_check_branch
      %29 = sbr.rel (0) target = $region9
    $region8: #{tpu_custom_call.1} parent=1 // pred_region
      _
    $region9: #{tpu_custom_call.1} parent=1 // pred_fallthru
      _
    // Predicated region
    $region10: #{tpu_custom_call.1} parent=1 // pred_check
      _
    $region11: #{tpu_custom_call.1} parent=1 // pred_check_branch
      %31 = sbr.rel (0) target = $region13
    $region12: #{tpu_custom_call.1} parent=1 // pred_region
      _
    $region13: #{tpu_custom_call.1} parent=1 // pred_fallthru
      _
    // Predicated region
    $region14: #{tpu_custom_call.1} parent=1 // pred_check
      _
    $region15: #{tpu_custom_call.1} parent=1 // pred_check_branch
      %33 = sbr.rel (0) target = $region17
    $region16: #{tpu_custom_call.1} parent=1 // pred_region
      _
    $region17: #{tpu_custom_call.1} parent=1 // pred_fallthru
      _
    %p34 = scmp.eq.s32.totalorder 0, 0
    // Predicated region
    $region18: #{tpu_custom_call.1} parent=1 // pred_check
      %p35 = pneg %p34
    $region19: #{tpu_custom_call.1} parent=1 // pred_check_branch
      %37 = sbr.rel (%p35) target = $region21
    $region20: #{tpu_custom_call.1} parent=1 // pred_region
      %vm38 = vcmask 97280
      %39 = vst.msk [vmem:[#allocation2] sm:$0xff] %vm38, 0.0
      %vm40 = vcmask 93184
      %41 = vst.msk [vmem:[#allocation2 + $0x8] sm:$0xf] %vm40, 0.0
    $region21: #{tpu_custom_call.1} parent=1 // pred_fallthru
      _
    %v42 = vld [vmem:[%s0] sm:$0xff]
    %v43 = vld [vmem:[%s1] sm:$0xf]
    %v44 = vld [vmem:[#allocation2] sm:$0xff]
    %v45 = vld [vmem:[#allocation2 + $0x8] sm:$0xf]
    %vm46 = vcmask 261120
    %v48 = vsel %vm46, %v42, 0
    %v51 = vsel %vm46, %v43, 0
    %53 = vmatprep.subr.mxu0 0.0
    %54 = vmatpush1.xpose.msra.mxu0 %v48
    %55 = vmatprep.subr.mxu0 0.0
    %56 = vmatpush1.xpose.msra.mxu0 %v51
    %57 = vmatprep.subr.mxu0 0.0
    %58 = vmatpush1.xpose.msra.mxu0 0.0
    %59 = vmatprep.subr.mxu0 0.0
    %60 = vmatpush1.xpose.msra.mxu0 0.0
    %61 = vmatprep.subr.mxu0 0.0
    %62 = vmatpush1.xpose.msra.mxu0 0.0
    %63 = vmatprep.subr.mxu0 0.0
    %64 = vmatpush1.xpose.msra.mxu0 0.0
    %65 = vmatprep.subr.mxu0 0.0
    %66 = vmatpush1.xpose.msra.mxu0 0.0
    %67 = vmatprep.subr.mxu0 0.0
    %68 = vmatpush1.xpose.msra.mxu0 0.0
    %69 = vmatprep.subr.mxu0 0.0
    %70 = vmatpush1.xpose.msra.mxu0 0.0
    %71 = vmatprep.subr.mxu0 0.0
    %72 = vmatpush1.xpose.msra.mxu0 0.0
    %73 = vmatprep.subr.mxu0 0.0
    %74 = vmatpush1.xpose.msra.mxu0 0.0
    %75 = vmatprep.subr.mxu0 0.0
    %76 = vmatpush1.xpose.msra.mxu0 0.0
    %77 = vmatprep.subr.mxu0 0.0
    %78 = vmatpush1.xpose.msra.mxu0 0.0
    %79 = vmatprep.subr.mxu0 0.0
    %80 = vmatpush1.xpose.msra.mxu0 0.0
    %81 = vmatprep.subr.mxu0 0.0
    %82 = vmatpush1.xpose.msra.mxu0 0.0
    %83 = vmatprep.subr.mxu0 0.0
    %84 = vmatpush1.xpose.msra.mxu0 0.0
    %85 = vmatprep.subr.mxu0 0.0
    %86 = vmatpush1.xpose.msra.mxu0 0.0
    %87 = vmatprep.subr.mxu0 0.0
    %88 = vmatpush1.xpose.msra.mxu0 0.0
    %89 = vmatprep.subr.mxu0 0.0
    %90 = vmatpush1.xpose.msra.mxu0 0.0
    %91 = vmatprep.subr.mxu0 0.0
    %92 = vmatpush1.xpose.msra.mxu0 0.0
    %93 = vmatprep.subr.mxu0 0.0
    %94 = vmatpush1.xpose.msra.mxu0 0.0
    %95 = vmatprep.subr.mxu0 0.0
    %96 = vmatpush1.xpose.msra.mxu0 0.0
    %97 = vmatprep.subr.mxu0 0.0
    %98 = vmatpush1.xpose.msra.mxu0 0.0
    %99 = vmatprep.subr.mxu0 0.0
    %100 = vmatpush1.xpose.msra.mxu0 0.0
    %101 = vmatprep.subr.mxu0 0.0
    %102 = vmatpush1.xpose.msra.mxu0 0.0
    %103 = vmatprep.subr.mxu0 0.0
    %104 = vmatpush1.xpose.msra.mxu0 0.0
    %105 = vmatprep.subr.mxu0 0.0
    %106 = vmatpush1.xpose.msra.mxu0 0.0
    %107 = vmatprep.subr.mxu0 0.0
    %108 = vmatpush1.xpose.msra.mxu0 0.0
    %109 = vmatprep.subr.mxu0 0.0
    %110 = vmatpush1.xpose.msra.mxu0 0.0
    %111 = vmatprep.subr.mxu0 0.0
    %112 = vmatpush1.xpose.msra.mxu0 0.0
    %113 = vmatprep.subr.mxu0 0.0
    %114 = vmatpush1.xpose.msra.mxu0 0.0
    %115 = vmatprep.subr.mxu0 0.0
    %116 = vmatpush1.xpose.msra.mxu0 0.0
    %117 = vmatprep.mubr.f32.mxu0 0.0
    %118 = vmatmul.mubr.f32.gmra.mrb[0].mxu0 %v48
    %v119 = vpop.f32.mrb[0].mxu0
    %v120 = vadd.f32 0.0, %v119
    %v121 = vpop.f32.mrb[0].mxu0
    %122 = vmatprep.mubr.f32.mxu0 0.0
    %123 = vmatmul.mubr.f32.gmra.mrb[0].mxu0 %v51
    %v124 = vpop.f32.mrb[0].mxu0
    %v125 = vadd.f32 0.0, %v124
    %v126 = vpop.f32.mrb[0].mxu0
    %127 = vdwg.mxu0
    %v128 = vadd.f32 %v44, %v120
    %v129 = vadd.f32 %v45, %v125
    %vm130 = vcmask 97280
    %131 = vst.msk [vmem:[#allocation2] sm:$0xff] %vm130, %v128
    %vm132 = vcmask 93184
    %133 = vst.msk [vmem:[#allocation2 + $0x8] sm:$0xf] %vm132, %v129
    // Predicated region
    $region22: #{tpu_custom_call.1} parent=1 // pred_check
      %p134 = pneg %p34
    $region23: #{tpu_custom_call.1} parent=1 // pred_check_branch
      %136 = sbr.rel (%p134) target = $region25
    $region24: #{tpu_custom_call.1} parent=1 // pred_region
      %v137 = vld [vmem:[#allocation2] sm:$0xff]
      %v138 = vld [vmem:[%s2] sm:$0x1]
      %v140 = vlaneseq
      %v141 = vshrl.u32 %v140, 7
      %v142 = vsub.s32 0, %v141
      %v143 = vrot.slane %v138, %v142
      %144 = vrot.lane.b32.xlu0 %v143, 8
      %v145 = vpop.permute.xlu0 %144
      %v147 = vadd.f32 %v137, %v145
      %vm148 = vcmask 97344
      %v149 = vsel %vm148, %v147, -inf
      %150 = vmax.xlane.f32.xlu0 %v149
      %v151 = vpop.xlane.xlu0 %150
      %v152 = vsub.f32 %v147, %v151
      %v153 = vmul.f32 %v152, 1.442695
      %v154 = vpow.pop %v153
      %156 = vrot.lane.b32.xlu0 %v154, 120
      %v157 = vpop.permute.xlu0 %156
      %vm159 = vcmask 31744
      %v160 = vsel %vm159, %v157, 0.0
      %161 = vadd.xlane.f32.xlu0 %v160
      %v162 = vpop.xlane.xlu0 %161
      %v163 = vrcp.pop %v162
      %v164 = vmul.f32 %v162, %v163
      %v165 = vsub.f32 2.0, %v164
      %v166 = vmul.f32 %v163, %v165
      %v167 = vmul.f32 %v154, %v166
      %v168 = vlaneseq
      %v169 = vand.u32 %v168, 127
      %v170 = vld [vmem:[%s3] sm:$0xff]
      %171 = vset.pattern.permute.xlu0 0
      %172 = vperm.xlu0 %171, %v170
      %v173 = vpop.permute.xlu0 %172
      %vm174 = vcmp.eq.s32.totalorder %v169, %v173
      %v175 = vsel %vm174, 1, 0
      %v176 = vcvt.s32.f32 %v175
      %178 = vrot.lane.b32.xlu0 %v176, 8
      %v179 = vpop.permute.xlu0 %178
      %v181 = vsub.f32 %v167, %v179
      %183 = vrot.lane.b32.xlu0 %v181, 120
      %v184 = vpop.permute.xlu0 %183
      %v185 = vsel %vm159, %v184, 0
      %187 = vmatprep.subr.mxu0 0.0
      %188 = vmatpush1.xpose.msra.mxu0 %v185
      %189 = vmatprep.subr.mxu0 0.0
      %190 = vmatpush1.xpose.msra.mxu0 0.0
      %191 = vmatprep.subr.mxu0 0.0
      %192 = vmatpush1.xpose.msra.mxu0 0.0
      %193 = vmatprep.subr.mxu0 0.0
      %194 = vmatpush1.xpose.msra.mxu0 0.0
      %195 = vmatprep.subr.mxu0 0.0
      %196 = vmatpush1.xpose.msra.mxu0 0.0
      %197 = vmatprep.subr.mxu0 0.0
      %198 = vmatpush1.xpose.msra.mxu0 0.0
      %199 = vmatprep.subr.mxu0 0.0
      %200 = vmatpush1.xpose.msra.mxu0 0.0
      %201 = vmatprep.subr.mxu0 0.0
      %202 = vmatpush1.xpose.msra.mxu0 0.0
      %203 = vmatprep.subr.mxu0 0.0
      %204 = vmatpush1.xpose.msra.mxu0 0.0
      %205 = vmatprep.subr.mxu0 0.0
      %206 = vmatpush1.xpose.msra.mxu0 0.0
      %207 = vmatprep.subr.mxu0 0.0
      %208 = vmatpush1.xpose.msra.mxu0 0.0
      %209 = vmatprep.subr.mxu0 0.0
      %210 = vmatpush1.xpose.msra.mxu0 0.0
      %211 = vmatprep.subr.mxu0 0.0
      %212 = vmatpush1.xpose.msra.mxu0 0.0
      %213 = vmatprep.subr.mxu0 0.0
      %214 = vmatpush1.xpose.msra.mxu0 0.0
      %215 = vmatprep.subr.mxu0 0.0
      %216 = vmatpush1.xpose.msra.mxu0 0.0
      %217 = vmatprep.subr.mxu0 0.0
      %218 = vmatpush1.xpose.msra.mxu0 0.0
      %219 = vmatprep.subr.mxu0 0.0
      %220 = vmatpush1.xpose.msra.mxu0 0.0
      %221 = vmatprep.subr.mxu0 0.0
      %222 = vmatpush1.xpose.msra.mxu0 0.0
      %223 = vmatprep.subr.mxu0 0.0
      %224 = vmatpush1.xpose.msra.mxu0 0.0
      %225 = vmatprep.subr.mxu0 0.0
      %226 = vmatpush1.xpose.msra.mxu0 0.0
      %227 = vmatprep.subr.mxu0 0.0
      %228 = vmatpush1.xpose.msra.mxu0 0.0
      %229 = vmatprep.subr.mxu0 0.0
      %230 = vmatpush1.xpose.msra.mxu0 0.0
      %231 = vmatprep.subr.mxu0 0.0
      %232 = vmatpush1.xpose.msra.mxu0 0.0
      %233 = vmatprep.subr.mxu0 0.0
      %234 = vmatpush1.xpose.msra.mxu0 0.0
      %235 = vmatprep.subr.mxu0 0.0
      %236 = vmatpush1.xpose.msra.mxu0 0.0
      %237 = vmatprep.subr.mxu0 0.0
      %238 = vmatpush1.xpose.msra.mxu0 0.0
      %239 = vmatprep.subr.mxu0 0.0
      %240 = vmatpush1.xpose.msra.mxu0 0.0
      %241 = vmatprep.subr.mxu0 0.0
      %242 = vmatpush1.xpose.msra.mxu0 0.0
      %243 = vmatprep.subr.mxu0 0.0
      %244 = vmatpush1.xpose.msra.mxu0 0.0
      %245 = vmatprep.subr.mxu0 0.0
      %246 = vmatpush1.xpose.msra.mxu0 0.0
      %247 = vmatprep.subr.mxu0 0.0
      %248 = vmatpush1.xpose.msra.mxu0 0.0
      %249 = vmatprep.subr.mxu0 0.0
      %250 = vmatpush1.xpose.msra.mxu0 0.0
      %251 = vmatprep.mubr.f32.mxu0 0.0
      %252 = vmatmul.mubr.f32.gmra.mrb[0].mxu0 %v185
      %v253 = vpop.f32.mrb[0].mxu0
      %v254 = vadd.f32 0.0, %v253
      %v255 = vpop.f32.mrb[0].mxu0
      %256 = vdwg.mxu0
      %258 = vrot.lane.b32.xlu0 %v147, 120
      %v259 = vpop.permute.xlu0 %258
      %261 = vst.msk [vmem:[%s4] sm:$0xff] %vm159, %v259
      %v262 = vlaneseq
      %v263 = vshrl.u32 %v262, 7
      %vm264 = vcmp.eq.s32.totalorder %v263, %v169
      %v265 = vsel %vm264, 1, 0
      %v266 = vcvt.s32.f32 %v265
      %v267 = vmul.f32 %v254, %v137
      %v268 = vmul.f32 %v267, %v266
      %vm269 = vcmask 64512
      %v270 = vsel %vm269, %v268, 0.0
      %271 = vadd.xlane.f32.xlu0 %v270
      %v272 = vpop.xlane.xlu0 %271
      %v273 = vrot.slane %v270, 4
      %v274 = vadd.f32 %v270, %v273
      %v275 = vrot.slane %v274, 2
      %v276 = vadd.f32 %v274, %v275
      %v277 = vrot.slane %v276, 1
      %v278 = vadd.f32 %v276, %v277
      %v279 = vsel %vm269, %v267, 0.0
      %280 = vadd.xlane.f32.xlu0 %v279
      %v281 = vpop.xlane.xlu0 %280
      %v282 = vrot.slane %v279, 4
      %v283 = vadd.f32 %v279, %v282
      %v284 = vrot.slane %v283, 2
      %v285 = vadd.f32 %v283, %v284
      %v286 = vrot.slane %v285, 1
      %v287 = vadd.f32 %v285, %v286
      %v288 = vrot.slane %v281, 4
      %v289 = vadd.f32 %v281, %v288
      %v290 = vrot.slane %v289, 2
      %v291 = vadd.f32 %v289, %v290
      %v292 = vrot.slane %v291, 1
      %v293 = vadd.f32 %v291, %v292
      %v294 = vrsqrt.pop %v272
      %v295 = vmul.f32 %v272, %v294
      %vm296 = vcmp.eq.f32.partialorder %v272, inf
      %v297 = vsel %vm296, %v272, %v295
      %vm298 = vcmp.eq.f32.partialorder %v272, 0.0
      %v299 = vand.u32 %v272, 2147483648
      %v300 = vsel %vm298, %v299, %v297
      %v301 = vadd.f32 %v300, 1e-09
      %v302 = vrcp.pop %v301
      %v303 = vmul.f32 %v301, %v302
      %v304 = vsub.f32 2.0, %v303
      %v305 = vmul.f32 %v302, %v304
      %v306 = vrsqrt.pop %v278
      %v307 = vmul.f32 %v278, %v306
      %vm308 = vcmp.eq.f32.partialorder %v278, inf
      %v309 = vsel %vm308, %v278, %v307
      %vm310 = vcmp.eq.f32.partialorder %v278, 0.0
      %v311 = vand.u32 %v278, 2147483648
      %v312 = vsel %vm310, %v311, %v309
      %v313 = vadd.f32 %v312, 1e-09
      %v314 = vrcp.pop %v313
      %v315 = vmul.f32 %v313, %v314
      %v316 = vsub.f32 2.0, %v315
      %v317 = vmul.f32 %v314, %v316
      %v318 = vmul.f32 %v267, %v305
      %v319 = vmul.f32 %v318, %v317
      %320 = vst.msk [vmem:[#allocation3] sm:$0xff] %vm269, %v319
      %v321 = vmul.f32 %v281, 0.125
      %v322 = vsub.f32 %v267, %v321
      %v323 = vmul.f32 %v287, 0.125
      %v324 = vsub.f32 %v322, %v323
      %v325 = vmul.f32 %v293, 0.015625
      %v326 = vadd.f32 %v324, %v325
      %v327 = vmul.f32 %v267, 0.125
      %328 = vst.msk [vmem:[#allocation5] sm:$0xff] %vm269, %v327
      %v329 = vmul.f32 %v326, 0.125
      %330 = vst.msk [vmem:[#allocation7] sm:$0xff] %vm269, %v329
      %v331 = vmul.f32 %v254, %v266
      %v332 = vsel %vm269, %v331, 0.0
      %333 = vadd.xlane.f32.xlu0 %v332
      %v334 = vpop.xlane.xlu0 %333
      %v335 = vrot.slane %v332, 4
      %v336 = vadd.f32 %v332, %v335
      %v337 = vrot.slane %v336, 2
      %v338 = vadd.f32 %v336, %v337
      %v339 = vrot.slane %v338, 1
      %v340 = vadd.f32 %v338, %v339
      %v341 = vsel %vm269, %v254, 0.0
      %342 = vadd.xlane.f32.xlu0 %v341
      %v343 = vpop.xlane.xlu0 %342
      %v344 = vrot.slane %v341, 4
      %v345 = vadd.f32 %v341, %v344
      %v346 = vrot.slane %v345, 2
      %v347 = vadd.f32 %v345, %v346
      %v348 = vrot.slane %v347, 1
      %v349 = vadd.f32 %v347, %v348
      %v350 = vrot.slane %v343, 4
      %v351 = vadd.f32 %v343, %v350
      %v352 = vrot.slane %v351, 2
      %v353 = vadd.f32 %v351, %v352
      %v354 = vrot.slane %v353, 1
      %v355 = vadd.f32 %v353, %v354
      %v356 = vrsqrt.pop %v334
      %v357 = vmul.f32 %v334, %v356
      %vm358 = vcmp.eq.f32.partialorder %v334, inf
      %v359 = vsel %vm358, %v334, %v357
      %vm360 = vcmp.eq.f32.partialorder %v334, 0.0
      %v361 = vand.u32 %v334, 2147483648
      %v362 = vsel %vm360, %v361, %v359
      %v363 = vadd.f32 %v362, 1e-09
      %v364 = vrcp.pop %v363
      %v365 = vmul.f32 %v363, %v364
      %v366 = vsub.f32 2.0, %v365
      %v367 = vmul.f32 %v364, %v366
      %v368 = vrsqrt.pop %v340
      %v369 = vmul.f32 %v340, %v368
      %vm370 = vcmp.eq.f32.partialorder %v340, inf
      %v371 = vsel %vm370, %v340, %v369
      %vm372 = vcmp.eq.f32.partialorder %v340, 0.0
      %v373 = vand.u32 %v340, 2147483648
      %v374 = vsel %vm372, %v373, %v371
      %v375 = vadd.f32 %v374, 1e-09
      %v376 = vrcp.pop %v375
      %v377 = vmul.f32 %v375, %v376
      %v378 = vsub.f32 2.0, %v377
      %v379 = vmul.f32 %v376, %v378
      %v380 = vmul.f32 %v254, %v367
      %v381 = vmul.f32 %v380, %v379
      %382 = vst.msk [vmem:[#allocation8] sm:$0xff] %vm269, %v381
      %v383 = vmul.f32 %v343, 0.125
      %v384 = vsub.f32 %v254, %v383
      %v385 = vmul.f32 %v349, 0.125
      %v386 = vsub.f32 %v384, %v385
      %v387 = vmul.f32 %v355, 0.015625
      %v388 = vadd.f32 %v386, %v387
      %v389 = vmul.f32 %v254, 0.125
      %390 = vst.msk [vmem:[#allocation10] sm:$0xff] %vm269, %v389
      %v391 = vmul.f32 %v388, 0.125
      %392 = vst.msk [vmem:[#allocation11] sm:$0xff] %vm269, %v391
      %v393 = vadd.f32 %v137, 1.0
      %v394 = vmul.f32 %v254, %v393
      %v395 = vmul.f32 %v394, %v266
      %v396 = vsel %vm269, %v395, 0.0
      %397 = vadd.xlane.f32.xlu0 %v396
      %v398 = vpop.xlane.xlu0 %397
      %v399 = vrot.slane %v396, 4
      %v400 = vadd.f32 %v396, %v399
      %v401 = vrot.slane %v400, 2
      %v402 = vadd.f32 %v400, %v401
      %v403 = vrot.slane %v402, 1
      %v404 = vadd.f32 %v402, %v403
      %v405 = vsel %vm269, %v394, 0.0
      %406 = vadd.xlane.f32.xlu0 %v405
      %v407 = vpop.xlane.xlu0 %406
      %v408 = vrot.slane %v405, 4
      %v409 = vadd.f32 %v405, %v408
      %v410 = vrot.slane %v409, 2
      %v411 = vadd.f32 %v409, %v410
      %v412 = vrot.slane %v411, 1
      %v413 = vadd.f32 %v411, %v412
      %v414 = vrot.slane %v407, 4
      %v415 = vadd.f32 %v407, %v414
      %v416 = vrot.slane %v415, 2
      %v417 = vadd.f32 %v415, %v416
      %v418 = vrot.slane %v417, 1
      %v419 = vadd.f32 %v417, %v418
      %v420 = vrsqrt.pop %v398
      %v421 = vmul.f32 %v398, %v420
      %vm422 = vcmp.eq.f32.partialorder %v398, inf
      %v423 = vsel %vm422, %v398, %v421
      %vm424 = vcmp.eq.f32.partialorder %v398, 0.0
      %v425 = vand.u32 %v398, 2147483648
      %v426 = vsel %vm424, %v425, %v423
      %v427 = vadd.f32 %v426, 1e-09
      %v428 = vrcp.pop %v427
      %v429 = vmul.f32 %v427, %v428
      %v430 = vsub.f32 2.0, %v429
      %v431 = vmul.f32 %v428, %v430
      %v432 = vrsqrt.pop %v404
      %v433 = vmul.f32 %v404, %v432
      %vm434 = vcmp.eq.f32.partialorder %v404, inf
      %v435 = vsel %vm434, %v404, %v433
      %vm436 = vcmp.eq.f32.partialorder %v404, 0.0
      %v437 = vand.u32 %v404, 2147483648
      %v438 = vsel %vm436, %v437, %v435
      %v439 = vadd.f32 %v438, 1e-09
      %v440 = vrcp.pop %v439
      %v441 = vmul.f32 %v439, %v440
      %v442 = vsub.f32 2.0, %v441
      %v443 = vmul.f32 %v440, %v442
      %v444 = vmul.f32 %v394, %v431
      %v445 = vmul.f32 %v444, %v443
      %446 = vst.msk [vmem:[#allocation13] sm:$0xff] %vm269, %v445
      %v447 = vmul.f32 %v407, 0.125
      %v448 = vsub.f32 %v394, %v447
      %v449 = vmul.f32 %v413, 0.125
      %v450 = vsub.f32 %v448, %v449
      %v451 = vmul.f32 %v419, 0.015625
      %v452 = vadd.f32 %v450, %v451
      %v453 = vmul.f32 %v452, 0.125
      %454 = vst.msk [vmem:[#allocation14] sm:$0xff] %vm269, %v453
      %455 = vst.msk [vmem:[#allocation16] sm:$0xff] %vm269, %v453
      %v456 = vrot.slane %v398, 4
      %v457 = vadd.f32 %v398, %v456
      %v458 = vrot.slane %v457, 2
      %v459 = vadd.f32 %v457, %v458
      %v460 = vrot.slane %v459, 1
      %v461 = vadd.f32 %v459, %v460
      %v462 = vmul.f32 %v419, 0.125
      %v463 = vsub.f32 %v461, %v462
      %v464 = vmul.f32 %v463, 0.125
      %vm465 = vcmask 0
      %466 = vst.msk [vmem:[#allocation17] sm:$0x1] %vm465, %v464
    $region25: #{tpu_custom_call.1} parent=1 // pred_fallthru
      _
    // Predicated region
    $region26: #{tpu_custom_call.1} parent=1 // pred_check
      _
    $region27: #{tpu_custom_call.1} parent=1 // pred_check_branch
      %468 = sbr.rel (0) target = $region29
    $region28: #{tpu_custom_call.1} parent=1 // pred_region
      _
    $region29: #{tpu_custom_call.1} parent=1 // pred_fallthru
      _
    // Predicated region
    $region30: #{tpu_custom_call.1} parent=1 // pred_check
      _
    $region31: #{tpu_custom_call.1} parent=1 // pred_check_branch
      %470 = sbr.rel (0) target = $region33
    $region32: #{tpu_custom_call.1} parent=1 // pred_region
      %s472 = ssub.s32 128, 128
      %473 = vsyncadd [#allocation4], %s472
      %s475 = sshll.u32 [#allocation3], 4
      %s476 = int_to_ptr.vmem [resolvable:$true] %s475
      %478 = dma.vmem_to_hbm [thread:$0]  %s476, 128, %s5, [#allocation4]
    $region33: #{tpu_custom_call.1} parent=1 // pred_fallthru
      _
    // Predicated region
    $region34: #{tpu_custom_call.1} parent=1 // pred_check
      _
    $region35: #{tpu_custom_call.1} parent=1 // pred_check_branch
      %480 = sbr.rel (0) target = $region37
    $region36: #{tpu_custom_call.1} parent=1 // pred_region
      %s482 = ssub.s32 128, 128
      %483 = vsyncadd [#allocation6], %s482
      %s485 = sshll.u32 [#allocation5], 4
      %s486 = int_to_ptr.vmem [resolvable:$true] %s485
      %488 = dma.vmem_to_hbm [thread:$0]  %s486, 128, %s6, [#allocation6]
    $region37: #{tpu_custom_call.1} parent=1 // pred_fallthru
      _
    // Predicated region
    $region38: #{tpu_custom_call.1} parent=1 // pred_check
      _
    $region39: #{tpu_custom_call.1} parent=1 // pred_check_branch
      %490 = sbr.rel (0) target = $region41
    $region40: #{tpu_custom_call.1} parent=1 // pred_region
      %s492 = ssub.s32 128, 128
      %493 = vsyncadd [#allocation6], %s492
      %s495 = sshll.u32 [#allocation7], 4
      %s496 = int_to_ptr.vmem [resolvable:$true] %s495
      %498 = dma.vmem_to_hbm [thread:$0]  %s496, 128, %s7, [#allocation6]
    $region41: #{tpu_custom_call.1} parent=1 // pred_fallthru
      _
    // Predicated region
    $region42: #{tpu_custom_call.1} parent=1 // pred_check
      _
    $region43: #{tpu_custom_call.1} parent=1 // pred_check_branch
      %500 = sbr.rel (0) target = $region45
    $region44: #{tpu_custom_call.1} parent=1 // pred_region
      %s502 = ssub.s32 128, 128
      %503 = vsyncadd [#allocation9], %s502
      %s505 = sshll.u32 [#allocation8], 4
      %s506 = int_to_ptr.vmem [resolvable:$true] %s505
      %508 = dma.vmem_to_hbm [thread:$0]  %s506, 128, %s8, [#allocation9]
    $region45: #{tpu_custom_call.1} parent=1 // pred_fallthru
      _
    // Predicated region
    $region46: #{tpu_custom_call.1} parent=1 // pred_check
      _
    $region47: #{tpu_custom_call.1} parent=1 // pred_check_branch
      %510 = sbr.rel (0) target = $region49
    $region48: #{tpu_custom_call.1} parent=1 // pred_region
      %s512 = ssub.s32 128, 128
      %513 = vsyncadd [#allocation9], %s512
      %s515 = sshll.u32 [#allocation10], 4
      %s516 = int_to_ptr.vmem [resolvable:$true] %s515
      %518 = dma.vmem_to_hbm [thread:$0]  %s516, 128, %s9, [#allocation9]
    $region49: #{tpu_custom_call.1} parent=1 // pred_fallthru
      _
    // Predicated region
    $region50: #{tpu_custom_call.1} parent=1 // pred_check
      _
    $region51: #{tpu_custom_call.1} parent=1 // pred_check_branch
      %520 = sbr.rel (0) target = $region53
    $region52: #{tpu_custom_call.1} parent=1 // pred_region
      %s522 = ssub.s32 128, 128
      %523 = vsyncadd [#allocation12], %s522
      %s525 = sshll.u32 [#allocation11], 4
      %s526 = int_to_ptr.vmem [resolvable:$true] %s525
      %528 = dma.vmem_to_hbm [thread:$0]  %s526, 128, %s10, [#allocation12]
    $region53: #{tpu_custom_call.1} parent=1 // pred_fallthru
      _
    // Predicated region
    $region54: #{tpu_custom_call.1} parent=1 // pred_check
      _
    $region55: #{tpu_custom_call.1} parent=1 // pred_check_branch
      %530 = sbr.rel (0) target = $region57
    $region56: #{tpu_custom_call.1} parent=1 // pred_region
      %s532 = ssub.s32 128, 128
      %533 = vsyncadd [#allocation12], %s532
      %s535 = sshll.u32 [#allocation13], 4
      %s536 = int_to_ptr.vmem [resolvable:$true] %s535
      %538 = dma.vmem_to_hbm [thread:$0]  %s536, 128, %s11, [#allocation12]
    $region57: #{tpu_custom_call.1} parent=1 // pred_fallthru
      _
    // Predicated region
    $region58: #{tpu_custom_call.1} parent=1 // pred_check
      _
    $region59: #{tpu_custom_call.1} parent=1 // pred_check_branch
      %540 = sbr.rel (0) target = $region61
    $region60: #{tpu_custom_call.1} parent=1 // pred_region
      %s542 = ssub.s32 128, 128
      %543 = vsyncadd [#allocation15], %s542
      %s545 = sshll.u32 [#allocation14], 4
      %s546 = int_to_ptr.vmem [resolvable:$true] %s545
      %548 = dma.vmem_to_hbm [thread:$0]  %s546, 128, %s12, [#allocation15]
    $region61: #{tpu_custom_call.1} parent=1 // pred_fallthru
      _
    // Predicated region
    $region62: #{tpu_custom_call.1} parent=1 // pred_check
      _
    $region63: #{tpu_custom_call.1} parent=1 // pred_check_branch
      %550 = sbr.rel (0) target = $region65
    $region64: #{tpu_custom_call.1} parent=1 // pred_region
      %s552 = ssub.s32 128, 128
      %553 = vsyncadd [#allocation15], %s552
      %s555 = sshll.u32 [#allocation16], 4
      %s556 = int_to_ptr.vmem [resolvable:$true] %s555
      %558 = dma.vmem_to_hbm [thread:$0]  %s556, 128, %s13, [#allocation15]
    $region65: #{tpu_custom_call.1} parent=1 // pred_fallthru
      _
    // Predicated region
    $region66: #{tpu_custom_call.1} parent=1 // pred_check
      _
    $region67: #{tpu_custom_call.1} parent=1 // pred_check_branch
      %560 = sbr.rel (0) target = $region69
    $region68: #{tpu_custom_call.1} parent=1 // pred_region
      %s562 = ssub.s32 16, 16
      %563 = vsyncadd [#allocation18], %s562
      %s565 = sshll.u32 [#allocation17], 4
      %s566 = int_to_ptr.vmem [resolvable:$true] %s565
      %568 = dma.vmem_to_hbm [thread:$0]  %s566, 16, %s14, [#allocation18]
    $region69: #{tpu_custom_call.1} parent=1 // pred_fallthru
      _
    // Predicated region
    $region70: #{tpu_custom_call.1} parent=1 // pred_check
      _
    $region71: #{tpu_custom_call.1} parent=1 // pred_check_branch
      %570 = sbr.rel (0) target = $region73
    $region72: #{tpu_custom_call.1} parent=1 // pred_region
      _
    $region73: #{tpu_custom_call.1} parent=1 // pred_fallthru
      _
    // Predicated region
    $region74: #{tpu_custom_call.1} parent=1 // pred_check
      _
    $region75: #{tpu_custom_call.1} parent=1 // pred_check_branch
      %572 = sbr.rel (0) target = $region77
    $region76: #{tpu_custom_call.1} parent=1 // pred_region
      %573 = dma.done [#allocation4], 128
    $region77: #{tpu_custom_call.1} parent=1 // pred_fallthru
      _
    // Predicated region
    $region78: #{tpu_custom_call.1} parent=1 // pred_check
      _
    $region79: #{tpu_custom_call.1} parent=1 // pred_check_branch
      %575 = sbr.rel (0) target = $region81
    $region80: #{tpu_custom_call.1} parent=1 // pred_region
      %576 = dma.done [#allocation6], 128
    $region81: #{tpu_custom_call.1} parent=1 // pred_fallthru
      _
    // Predicated region
    $region82: #{tpu_custom_call.1} parent=1 // pred_check
      _
    $region83: #{tpu_custom_call.1} parent=1 // pred_check_branch
      %578 = sbr.rel (0) target = $region85
    $region84: #{tpu_custom_call.1} parent=1 // pred_region
      %579 = dma.done [#allocation6], 128
    $region85: #{tpu_custom_call.1} parent=1 // pred_fallthru
      _
    // Predicated region
    $region86: #{tpu_custom_call.1} parent=1 // pred_check
      _
    $region87: #{tpu_custom_call.1} parent=1 // pred_check_branch
      %581 = sbr.rel (0) target = $region89
    $region88: #{tpu_custom_call.1} parent=1 // pred_region
      %582 = dma.done [#allocation9], 128
    $region89: #{tpu_custom_call.1} parent=1 // pred_fallthru
      _
    // Predicated region
    $region90: #{tpu_custom_call.1} parent=1 // pred_check
      _
    $region91: #{tpu_custom_call.1} parent=1 // pred_check_branch
      %584 = sbr.rel (0) target = $region93
    $region92: #{tpu_custom_call.1} parent=1 // pred_region
      %585 = dma.done [#allocation9], 128
    $region93: #{tpu_custom_call.1} parent=1 // pred_fallthru
      _
    // Predicated region
    $region94: #{tpu_custom_call.1} parent=1 // pred_check
      _
    $region95: #{tpu_custom_call.1} parent=1 // pred_check_branch
      %587 = sbr.rel (0) target = $region97
    $region96: #{tpu_custom_call.1} parent=1 // pred_region
      %588 = dma.done [#allocation12], 128
    $region97: #{tpu_custom_call.1} parent=1 // pred_fallthru
      _
    // Predicated region
    $region98: #{tpu_custom_call.1} parent=1 // pred_check
      _
    $region99: #{tpu_custom_call.1} parent=1 // pred_check_branch
      %590 = sbr.rel (0) target = $region101
    $region100: #{tpu_custom_call.1} parent=1 // pred_region
      %591 = dma.done [#allocation12], 128
    $region101: #{tpu_custom_call.1} parent=1 // pred_fallthru
      _
    // Predicated region
    $region102: #{tpu_custom_call.1} parent=1 // pred_check
      _
    $region103: #{tpu_custom_call.1} parent=1 // pred_check_branch
      %593 = sbr.rel (0) target = $region105
    $region104: #{tpu_custom_call.1} parent=1 // pred_region
      %594 = dma.done [#allocation15], 128
    $region105: #{tpu_custom_call.1} parent=1 // pred_fallthru
      _
    // Predicated region
    $region106: #{tpu_custom_call.1} parent=1 // pred_check
      _
    $region107: #{tpu_custom_call.1} parent=1 // pred_check_branch
      %596 = sbr.rel (0) target = $region109
    $region108: #{tpu_custom_call.1} parent=1 // pred_region
      %597 = dma.done [#allocation15], 128
    $region109: #{tpu_custom_call.1} parent=1 // pred_fallthru
      _
    // Predicated region
    $region110: #{tpu_custom_call.1} parent=1 // pred_check
      _
    $region111: #{tpu_custom_call.1} parent=1 // pred_check_branch
      %599 = sbr.rel (0) target = $region113
    $region112: #{tpu_custom_call.1} parent=1 // pred_region
      %600 = dma.done [#allocation18], 16
    $region113: #{tpu_custom_call.1} parent=1 // pred_fallthru
      _
    %601 = vsyncpa [#allocation4], 1
    %602 = vsyncpa [#allocation6], 1
    %603 = vsyncpa [#allocation9], 1
    %604 = vsyncpa [#allocation12], 1
    %605 = vsyncpa [#allocation15], 1
    %606 = vsyncpa [#allocation18], 1

</llo_original>
